<compile_context>
chip_gen: v7x
topology: tpu7x:2x2x1
jax: 0.10.0
libtpu: 0.0.40
codegen_flags: <defaults>
</compile_context>

<pallas_src>
import functools

import jax
import jax.numpy as jnp
from jax import lax
from jax.experimental import pallas as pl
from jax.experimental.pallas import tpu as pltpu


def _resnet_block_kernel(x_ref, m0_ref, m1_ref, ms_ref, b0_ref, b1_ref,
                         out_ref, *, img_h, tile_h, use_bias1,
                         learned_shortcut, fold_shortcut):
    """One (batch, row-strip) tile, fully fused.

    x_ref   : (tile_h+4, W*fin)  f32   input rows with a 2-row halo (zero outside image)
    m0_ref  : (3*W*fin, W*fhid)        conv_0 band matrix, dy taps stacked along K
    m1_ref  : (3*W*fhid [+W*fin], W*fout)
                                       0.1*conv_1 band matrix (dy stacked along K),
                                       with the 1x1 shortcut appended as the last
                                       K block when fold_shortcut
    ms_ref  : (W*fin, W*fout) or dummy separate f32 shortcut matrix (bf16 path only)
    b0_ref  : (1, W*fhid)  f32         conv_0 bias tiled over W
    b1_ref  : (1, W*fout)  f32         0.1 * conv_1 bias tiled over W (or dummy)
    out_ref : (tile_h, W*fout)
    """
    t = pl.program_id(1)
    cdt = m0_ref.dtype                         # MXU operand dtype (f32 or bf16)

    x = x_ref[...]                             # f32 (residual path needs it)
    a = jnp.where(x >= 0, x, 0.2 * x)          # leaky_relu(x), computed in f32
    a = a.astype(cdt)

    # ---- conv_0: ONE MXU matmul, K = 3*W*fin --------------------------------
    r = tile_h + 2                             # hidden rows needed by conv_1
    lhs0 = jnp.concatenate([a[0:r], a[1:1 + r], a[2:2 + r]], axis=-1)
    hid = jnp.dot(lhs0, m0_ref[...], preferred_element_type=jnp.float32)
    hid = hid + b0_ref[...]                    # bias + activation in f32
    hid = jnp.where(hid >= 0, hid, 0.2 * hid)  # leaky_relu(conv_0(.))

    # Hidden rows outside the image realize conv_1's row zero-padding.
    g = (t * tile_h - 1) + lax.broadcasted_iota(jnp.int32, hid.shape, 0)
    hid = jnp.where((g >= 0) & (g < img_h), hid, 0.0)
    hid = hid.astype(cdt)

    # ---- conv_1 (+ folded 0.1 scale, bias, shortcut): ONE MXU matmul --------
    xc = x[2:2 + tile_h]                       # un-activated centre rows, f32
    parts = [hid[0:tile_h], hid[1:1 + tile_h], hid[2:2 + tile_h]]
    if fold_shortcut:
        parts.append(xc.astype(cdt))           # shortcut as an extra K block
    lhs1 = jnp.concatenate(parts, axis=-1)
    acc = jnp.dot(lhs1, m1_ref[...], preferred_element_type=jnp.float32)
    if use_bias1:
        acc = acc + b1_ref[...]                # 0.1*b1 already folded

    if fold_shortcut:
        out = acc
    elif learned_shortcut:                     # bf16 path: residual stays f32
        out = acc + jnp.dot(xc, ms_ref[...], preferred_element_type=jnp.float32)
    else:                                      # identity shortcut (fin == fout)
        out = acc + xc
    out_ref[...] = out.astype(out_ref.dtype)


def _band_matrices(w_oihw, img_w):
    """Lower a 3x3 conv (padding=1 along W) to 3 banded f32 matrices, one per dy.

    M[dy, (w+dx-1)*Cin + ci, w*Cout + co] = w_oihw[co, ci, dy, dx]
    for 0 <= w+dx-1 < W (out-of-range taps realize the conv's width zero-pad).
    """
    _, _, kh, kw = w_oihw.shape
    taps = jnp.transpose(w_oihw, (2, 3, 1, 0)).astype(jnp.float32)   # (3,3,ci,co)
    mats = []
    for dy in range(kh):
        m = None
        for dx in range(kw):
            shift = jnp.eye(img_w, img_w, k=1 - dx, dtype=jnp.float32)
            term = jnp.kron(shift, taps[dy, dx])
            m = term if m is None else m + term
        mats.append(m)
    return jnp.stack(mats)                     # (3, W*Cin, W*Cout)


def resnet_block_forward(x_nchw, w0, b0, w1, b1, ws, *, is_bias=True,
                         tile_h=None, compute_dtype=jnp.float32):
    """x_nchw: (B, fin, H, W).  Weights in PyTorch layout:
       w0 (fhid, fin, 3, 3), b0 (fhid,), w1 (fout, fhid, 3, 3), b1 (fout,),
       ws (fout, fin, 1, 1) or None (identity shortcut, requires fin == fout).
    """
    B, fin, H, W = x_nchw.shape
    fhid = w0.shape[0]
    fout = w1.shape[0]
    learned_shortcut = ws is not None
    if not learned_shortcut:
        assert fin == fout, "identity shortcut requires fin == fout"

    compute_dtype = jnp.dtype(compute_dtype)
    # Fold the 1x1 shortcut into the conv_1 matmul only when the MXU operands
    # are f32; in bf16 mode the residual path stays in f32 (separate small dot).
    fold_shortcut = learned_shortcut and compute_dtype == jnp.dtype(jnp.float32)

    # Row-strip size: full image when it fits (H <= 64), else the largest
    # 8-aligned divisor <= 64.  Bigger strips fill the MXU (M rows), cut the
    # ~0.35us/step grid overhead and shrink the halo to 1 + 4/tile_h.
    if tile_h is None:
        tile_h = H if H <= 64 else next(
            (c for c in (64, 32, 16, 8) if H % c == 0), H)
    assert H % tile_h == 0, (H, tile_h)
    n_t = H // tile_h

    wcin, wchid, wcout = W * fin, W * fhid, W * fout

    # NCHW -> lane-dense (B, H, W*Cin) f32 slab + 2 zero halo rows top/bottom.
    # TODO(synk): if the surrounding model keeps this lane-dense layout across
    # blocks, these transposes (and the inverse below) can be dropped entirely.
    xf = jnp.transpose(x_nchw, (0, 2, 3, 1)).reshape(B, H, wcin)
    xf = jnp.pad(xf, ((0, 0), (2, 2), (0, 0))).astype(jnp.float32)
    if n_t == 1:
        xt = xf[:, None]                        # single strip: no halo duplication
    else:
        # Halo duplication ratio is only 1 + 4/tile_h (<= 1.125 for tile_h >= 32).
        xt = jnp.stack([xf[:, t * tile_h:t * tile_h + tile_h + 4]
                        for t in range(n_t)], axis=1)

    # Banded weights with the three dy taps stacked along K -> one matmul per
    # conv; 0.1 residual scale and b1 folded into conv_1; learned shortcut
    # appended as an extra K block in the f32 path.
    m0s = _band_matrices(w0, W).reshape(3 * wcin, wchid)
    m1s = 0.1 * _band_matrices(w1, W).reshape(3 * wchid, wcout)
    ms = None
    if learned_shortcut:
        ms = jnp.kron(jnp.eye(W, dtype=jnp.float32),
                      jnp.transpose(ws[:, :, 0, 0]).astype(jnp.float32))
    if fold_shortcut:
        m1s = jnp.concatenate([m1s, ms], axis=0)     # (3*wchid + wcin, wcout)
    m0s = m0s.astype(compute_dtype)
    m1s = m1s.astype(compute_dtype)
    if learned_shortcut and not fold_shortcut:
        ms_arg = ms                                  # separate f32 shortcut matmul
    else:
        ms_arg = jnp.zeros((8, 128), jnp.float32)    # dead placeholder (never read)

    b0_row = jnp.tile(b0.astype(jnp.float32), W).reshape(1, wchid)
    if is_bias:
        b1_row = 0.1 * jnp.tile(b1.astype(jnp.float32), W).reshape(1, wcout)
    else:
        b1_row = jnp.zeros((1, 8), jnp.float32)      # dead placeholder (never read)

    kernel = functools.partial(
        _resnet_block_kernel, img_h=H, tile_h=tile_h, use_bias1=is_bias,
        learned_shortcut=learned_shortcut, fold_shortcut=fold_shortcut)

    # Actually-executed banded-matmul FLOPs (advisory scheduler hint only).
    k1 = m1s.shape[0]
    flops = 2 * B * n_t * ((tile_h + 2) * (3 * wcin) * wchid
                           + tile_h * k1 * wcout)
    if learned_shortcut and not fold_shortcut:
        flops += 2 * B * H * wcin * wcout
    bytes_accessed = int(sum(int(v.size) * v.dtype.itemsize
                             for v in (xt, m0s, m1s, ms_arg, b0_row, b1_row))
                         + B * H * wcout * 4)

    out = pl.pallas_call(
        kernel,
        out_shape=jax.ShapeDtypeStruct((B, H, wcout), jnp.float32),
        grid=(B, n_t),
        in_specs=[
            # Per-tile input slab (rows with halo).
            pl.BlockSpec((None, None, tile_h + 4, wcin),
                         lambda b, t: (b, t, 0, 0)),
            # Weights / biases: constant index map -> fetched once, resident.
            # TODO(synk): at production W*C, set pipeline_mode=pl.Buffered(1)
            # on the weight specs and switch to W-blocked band-diagonal weights
            # (pltpu.roll width shifts) to stay inside v7x's 64 MiB VMEM.
            pl.BlockSpec(m0s.shape, lambda b, t: (0, 0)),
            pl.BlockSpec(m1s.shape, lambda b, t: (0, 0)),
            pl.BlockSpec(ms_arg.shape, lambda b, t: (0, 0)),
            pl.BlockSpec(b0_row.shape, lambda b, t: (0, 0)),
            pl.BlockSpec(b1_row.shape, lambda b, t: (0, 0)),
        ],
        out_specs=pl.BlockSpec((None, tile_h, wcout), lambda b, t: (b, t, 0)),
        compiler_params=pltpu.CompilerParams(
            dimension_semantics=("parallel", "parallel"),
            vmem_limit_bytes=32 * 1024 * 1024),
        cost_estimate=pl.CostEstimate(flops=int(flops), transcendentals=0,
                                      bytes_accessed=bytes_accessed),
    )(xt, m0s, m1s, ms_arg, b0_row, b1_row)

    return jnp.transpose(out.reshape(B, H, W, fout), (0, 3, 1, 2))


def _reference_forward(x, w0, b0, w1, b1, ws, *, is_bias=True):
    """Pure-JAX reference in PyTorch NCHW / OIHW layout."""
    def lrelu(v):
        return jnp.where(v >= 0, v, 0.2 * v)

    def conv3x3(inp, w, b):
        out = lax.conv_general_dilated(
            inp, w, window_strides=(1, 1), padding=((1, 1), (1, 1)),
            dimension_numbers=('NCHW', 'OIHW', 'NCHW'))
        return out + b.reshape(1, -1, 1, 1) if b is not None else out

    dx_ = conv3x3(lrelu(x), w0, b0)
    dx_ = conv3x3(lrelu(dx_), w1, b1 if is_bias else None)
    if ws is not None:
        xs = lax.conv_general_dilated(
            x, ws, window_strides=(1, 1), padding=((0, 0), (0, 0)),
            dimension_numbers=('NCHW', 'OIHW', 'NCHW'))
    else:
        xs = x
    return xs + 0.1 * dx_


if __name__ == "__main__":
    # Small shapes consistent with the module: fin != fout -> learned shortcut.
    B, fin, fout, H, W = 2, 4, 8, 16, 16
    fhid = min(fin, fout)          # module default when fhidden is None
    is_bias = True

    key = jax.random.PRNGKey(0)
    kx, k0, kb0, k1, kb1, ks = jax.random.split(key, 6)

    x = jax.random.normal(kx, (B, fin, H, W), dtype=jnp.float32)
    w0 = 0.1 * jax.random.normal(k0, (fhid, fin, 3, 3), dtype=jnp.float32)
    b0 = 0.1 * jax.random.normal(kb0, (fhid,), dtype=jnp.float32)
    w1 = 0.1 * jax.random.normal(k1, (fout, fhid, 3, 3), dtype=jnp.float32)
    b1 = 0.1 * jax.random.normal(kb1, (fout,), dtype=jnp.float32)
    ws = 0.1 * jax.random.normal(ks, (fout, fin, 1, 1), dtype=jnp.float32)

    ref = _reference_forward(x, w0, b0, w1, b1, ws, is_bias=is_bias)

    # Default (f32 MXU operands): tight match to the f32 reference.
    out = jax.block_until_ready(
        resnet_block_forward(x, w0, b0, w1, b1, ws, is_bias=is_bias))
    assert out.shape == (B, fout, H, W), out.shape
    max_err = float(jnp.max(jnp.abs(out - ref)))
    assert jnp.allclose(out, ref, atol=2e-4, rtol=2e-4), max_err

    # bf16 MXU operands (v6e/v7x fast path): only dot operands are bf16,
    # activations / biases / residual path stay f32 -> looser tolerance.
    out_bf16 = jax.block_until_ready(
        resnet_block_forward(x, w0, b0, w1, b1, ws, is_bias=is_bias,
                             compute_dtype=jnp.bfloat16))
    max_err_bf16 = float(jnp.max(jnp.abs(out_bf16 - ref)))
    assert jnp.allclose(out_bf16, ref, atol=5e-2, rtol=5e-2), max_err_bf16

    print("KERNEL_OK")
</pallas_src>

<mosaic_0001>
module attributes {stable_mosaic.version = 11 : i64} {
  func.func @_resnet_block_kernel(%arg0: i32, %arg1: i32, %arg2: memref<1x1x20x64xf32, #tpu.memory_space<vmem>>, %arg3: memref<192x64xf32, #tpu.memory_space<vmem>>, %arg4: memref<256x128xf32, #tpu.memory_space<vmem>>, %arg5: memref<8x128xf32, #tpu.memory_space<vmem>>, %arg6: memref<1x64xf32, #tpu.memory_space<vmem>>, %arg7: memref<1x128xf32, #tpu.memory_space<vmem>>, %arg8: memref<1x16x128xf32, #tpu.memory_space<vmem>>) attributes {dimension_semantics = [#tpu.dimension_semantics<parallel>, #tpu.dimension_semantics<parallel>], iteration_bounds = array<i64: 2, 1>, scalar_prefetch = 0 : i64, scratch_operands = 0 : i64, tpu.core_type = #tpu.core_type<tc>, window_params = [{transform_indices = @transform_0, window_bounds = array<i64: 1, 1, 20, 64>}, {pipeline_mode = #tpu.pipeline_mode<synchronous>, transform_indices = @transform_1, window_bounds = array<i64: 192, 64>}, {pipeline_mode = #tpu.pipeline_mode<synchronous>, transform_indices = @transform_2, window_bounds = array<i64: 256, 128>}, {pipeline_mode = #tpu.pipeline_mode<synchronous>, transform_indices = @transform_3, window_bounds = array<i64: 8, 128>}, {pipeline_mode = #tpu.pipeline_mode<synchronous>, transform_indices = @transform_4, window_bounds = array<i64: 1, 64>}, {pipeline_mode = #tpu.pipeline_mode<synchronous>, transform_indices = @transform_5, window_bounds = array<i64: 1, 128>}, {transform_indices = @transform_6, window_bounds = array<i64: 1, 16, 128>}]} {
    %c0 = arith.constant 0 : index
    %c0_0 = arith.constant 0 : index
    %c0_1 = arith.constant 0 : index
    %c0_2 = arith.constant 0 : index
    %0 = vector.load %arg2[%c0, %c0_0, %c0_1, %c0_2] : memref<1x1x20x64xf32, #tpu.memory_space<vmem>>, vector<1x1x20x64xf32>
    %1 = vector.shape_cast %0 : vector<1x1x20x64xf32> to vector<20x64xf32>
    %cst = arith.constant 0.000000e+00 : f32
    %2 = vector.broadcast %cst : f32 to vector<20x64xf32>
    %3 = arith.cmpf oge, %1, %2 : vector<20x64xf32>
    %cst_3 = arith.constant 2.000000e-01 : f32
    %4 = vector.broadcast %cst_3 : f32 to vector<20x64xf32>
    %5 = arith.mulf %4, %1 : vector<20x64xf32>
    %6 = arith.select %3, %1, %5 : vector<20x64xi1>, vector<20x64xf32>
    %7 = vector.extract_strided_slice %6 {offsets = [0, 0], sizes = [18, 64], strides = [1, 1]} : vector<20x64xf32> to vector<18x64xf32>
    %8 = vector.extract_strided_slice %6 {offsets = [1, 0], sizes = [18, 64], strides = [1, 1]} : vector<20x64xf32> to vector<18x64xf32>
    %9 = vector.extract_strided_slice %6 {offsets = [2, 0], sizes = [18, 64], strides = [1, 1]} : vector<20x64xf32> to vector<18x64xf32>
    %10 = tpu.concatenate %7, %8, %9 in 1 : vector<18x64xf32>, vector<18x64xf32>, vector<18x64xf32> -> vector<18x192xf32>
    %c0_4 = arith.constant 0 : index
    %c0_5 = arith.constant 0 : index
    %11 = vector.load %arg3[%c0_4, %c0_5] : memref<192x64xf32, #tpu.memory_space<vmem>>, vector<192x64xf32>
    %cst_6 = arith.constant dense<0.000000e+00> : vector<18x64xf32>
    %12 = tpu.matmul %10, %11, %cst_6 {dimension_numbers = #tpu.dot_dimension_numbers<[1], [0], [0], [1], [0, 0, 1, 1], [], []>} : vector<18x192xf32>, vector<192x64xf32>, vector<18x64xf32> -> vector<18x64xf32>
    %c0_7 = arith.constant 0 : index
    %c0_8 = arith.constant 0 : index
    %13 = vector.load %arg6[%c0_7, %c0_8] : memref<1x64xf32, #tpu.memory_space<vmem>>, vector<1x64xf32>
    %14 = vector.broadcast %13 : vector<1x64xf32> to vector<18x64xf32>
    %15 = arith.addf %12, %14 : vector<18x64xf32>
    %cst_9 = arith.constant 0.000000e+00 : f32
    %16 = vector.broadcast %cst_9 : f32 to vector<18x64xf32>
    %17 = arith.cmpf oge, %15, %16 : vector<18x64xf32>
    %cst_10 = arith.constant 2.000000e-01 : f32
    %18 = vector.broadcast %cst_10 : f32 to vector<18x64xf32>
    %19 = arith.mulf %18, %15 : vector<18x64xf32>
    %20 = arith.select %17, %15, %19 : vector<18x64xi1>, vector<18x64xf32>
    %c16_i32 = arith.constant 16 : i32
    %21 = arith.muli %arg1, %c16_i32 : i32
    %c1_i32 = arith.constant 1 : i32
    %22 = arith.subi %21, %c1_i32 : i32
    %23 = tpu.iota {dimensions = array<i32: 0>} : vector<18x64xi32>
    %24 = vector.broadcast %22 : i32 to vector<18x64xi32>
    %25 = arith.addi %24, %23 : vector<18x64xi32>
    %c0_i32 = arith.constant 0 : i32
    %26 = vector.broadcast %c0_i32 : i32 to vector<18x64xi32>
    %27 = arith.cmpi sge, %25, %26 : vector<18x64xi32>
    %c16_i32_11 = arith.constant 16 : i32
    %28 = vector.broadcast %c16_i32_11 : i32 to vector<18x64xi32>
    %29 = arith.cmpi slt, %25, %28 : vector<18x64xi32>
    %30 = arith.andi %27, %29 : vector<18x64xi1>
    %cst_12 = arith.constant 0.000000e+00 : f32
    %31 = vector.broadcast %cst_12 : f32 to vector<18x64xf32>
    %32 = arith.select %30, %20, %31 : vector<18x64xi1>, vector<18x64xf32>
    %33 = vector.extract_strided_slice %1 {offsets = [2, 0], sizes = [16, 64], strides = [1, 1]} : vector<20x64xf32> to vector<16x64xf32>
    %34 = vector.extract_strided_slice %32 {offsets = [0, 0], sizes = [16, 64], strides = [1, 1]} : vector<18x64xf32> to vector<16x64xf32>
    %35 = vector.extract_strided_slice %32 {offsets = [1, 0], sizes = [16, 64], strides = [1, 1]} : vector<18x64xf32> to vector<16x64xf32>
    %36 = vector.extract_strided_slice %32 {offsets = [2, 0], sizes = [16, 64], strides = [1, 1]} : vector<18x64xf32> to vector<16x64xf32>
    %37 = tpu.concatenate %34, %35, %36, %33 in 1 : vector<16x64xf32>, vector<16x64xf32>, vector<16x64xf32>, vector<16x64xf32> -> vector<16x256xf32>
    %c0_13 = arith.constant 0 : index
    %c0_14 = arith.constant 0 : index
    %38 = vector.load %arg4[%c0_13, %c0_14] : memref<256x128xf32, #tpu.memory_space<vmem>>, vector<256x128xf32>
    %cst_15 = arith.constant dense<0.000000e+00> : vector<16x128xf32>
    %39 = tpu.matmul %37, %38, %cst_15 {dimension_numbers = #tpu.dot_dimension_numbers<[1], [0], [0], [1], [0, 0, 1, 1], [], []>} : vector<16x256xf32>, vector<256x128xf32>, vector<16x128xf32> -> vector<16x128xf32>
    %c0_16 = arith.constant 0 : index
    %c0_17 = arith.constant 0 : index
    %40 = vector.load %arg7[%c0_16, %c0_17] : memref<1x128xf32, #tpu.memory_space<vmem>>, vector<1x128xf32>
    %41 = vector.broadcast %40 : vector<1x128xf32> to vector<16x128xf32>
    %42 = arith.addf %39, %41 : vector<16x128xf32>
    %c0_18 = arith.constant 0 : index
    %c0_19 = arith.constant 0 : index
    %c0_20 = arith.constant 0 : index
    %43 = vector.load %arg8[%c0_18, %c0_19, %c0_20] : memref<1x16x128xf32, #tpu.memory_space<vmem>>, vector<1x16x128xf32>
    %44 = vector.shape_cast %43 : vector<1x16x128xf32> to vector<16x128xf32>
    %45 = vector.shape_cast %42 : vector<16x128xf32> to vector<1x16x128xf32>
    tpu.vector_store %arg8[%c0_18, %c0_19, %c0_20], %45 {strides = array<i32>} : memref<1x16x128xf32, #tpu.memory_space<vmem>>, vector<1x16x128xf32>,
    return
  }
  func.func @transform_0(%arg0: i32, %arg1: i32) -> (i32, i32, i32, i32) {
    %c0_i32 = arith.constant 0 : i32
    %c0_i32_0 = arith.constant 0 : i32
    %c0_i32_1 = arith.constant 0 : i32
    return %arg0, %arg1, %c0_i32, %c0_i32_0 : i32, i32, i32, i32
  }
  func.func @transform_1(%arg0: i32, %arg1: i32) -> (i32, i32) {
    %c0_i32 = arith.constant 0 : i32
    %c0_i32_0 = arith.constant 0 : i32
    %c0_i32_1 = arith.constant 0 : i32
    return %c0_i32, %c0_i32_0 : i32, i32
  }
  func.func @transform_2(%arg0: i32, %arg1: i32) -> (i32, i32) {
    %c0_i32 = arith.constant 0 : i32
    %c0_i32_0 = arith.constant 0 : i32
    %c0_i32_1 = arith.constant 0 : i32
    return %c0_i32, %c0_i32_0 : i32, i32
  }
  func.func @transform_3(%arg0: i32, %arg1: i32) -> (i32, i32) {
    %c0_i32 = arith.constant 0 : i32
    %c0_i32_0 = arith.constant 0 : i32
    %c0_i32_1 = arith.constant 0 : i32
    return %c0_i32, %c0_i32_0 : i32, i32
  }
  func.func @transform_4(%arg0: i32, %arg1: i32) -> (i32, i32) {
    %c0_i32 = arith.constant 0 : i32
    %c0_i32_0 = arith.constant 0 : i32
    %c0_i32_1 = arith.constant 0 : i32
    return %c0_i32, %c0_i32_0 : i32, i32
  }
  func.func @transform_5(%arg0: i32, %arg1: i32) -> (i32, i32) {
    %c0_i32 = arith.constant 0 : i32
    %c0_i32_0 = arith.constant 0 : i32
    %c0_i32_1 = arith.constant 0 : i32
    return %c0_i32, %c0_i32_0 : i32, i32
  }
  func.func @transform_6(%arg0: i32, %arg1: i32) -> (i32, i32, i32) {
    %c0_i32 = arith.constant 0 : i32
    %c0_i32_0 = arith.constant 0 : i32
    return %arg0, %arg1, %c0_i32 : i32, i32, i32
  }
}

</mosaic_0001>

<llo_original>
// kernel: tpu_custom_call.1
$region0: #{tpu_custom_call.1}
  #allocation0 [shape = 'u32[]', space=smem, size = 0x4, offset = 0x4, fixed_abs, tag = 'smem constant byte address 0x4 - core index']
  #allocation1 [shape = 'u32[144,128]{1,0:T(1,128)}', space=vmem, size = 0x12000, scoped, tag = 'internal scratch']
  %s0 = inlined_call_operand.vmem [shape: f32[2,1,20,64], index: 0, kind: input, shape index: {}]
  %s1 = inlined_call_operand.vmem [shape: f32[192,64], index: 1, kind: input, shape index: {}]
  %s2 = inlined_call_operand.vmem [shape: f32[256,128], index: 2, kind: input, shape index: {}]
  %s3 = inlined_call_operand.vmem [shape: f32[8,128], index: 3, kind: input, shape index: {}]
  %s4 = inlined_call_operand.vmem [shape: f32[1,64], index: 4, kind: input, shape index: {}]
  %s5 = inlined_call_operand.vmem [shape: f32[1,128], index: 5, kind: input, shape index: {}]
  %s6 = inlined_call_operand.hbm [shape: f32[2,16,128], index: 6, kind: output, shape index: {}]
  %s7 = sld [smem:[#allocation0]]
  $region57: #{tpu_custom_call.1} parent=0
    _
  %s9 = ssub.s32 1, %s7
  %s10 = scalar_select 0, %s9, %s7
  $region1: #{tpu_custom_call.1} parent=0
    #allocation2 [shape = 'u8[16384]{0}', space=vmem, size = 0x4000, scoped, tag = 'output window, operand 0']
    #allocation3 [shape = 's32[2]{0}', space=sflag, size = 0x8, scoped, tag = 'scoped memory for tpu_custom_call.1']
    %11 = vsyncpa [#allocation3], 0
    %s12 = scalar_lea.sflag [#allocation3], 1
    %13 = vsyncpa %s12, 0
    loop: start=0, step=1, limit=4
    $region2: #{tpu_custom_call.1} parent=1 // loop_pre_header
      _
    $region3: #{tpu_custom_call.1} parent=1 // loop_header
      %s15 = sphi 0, %s19
      %p16 = scmp.ge.s32.totalorder %s15, 4
      %s22 = sphi 0, %s34
      %s23 = sphi 0, %s30
      %s24 = sphi 0, %s22
      %s25 = sphi 0, %s23
      %s26 = sphi 0, %s24
      %s27 = sphi 0, %s25
      %s39 = sphi 0, %s41
      %s42 = sphi 0, %s39
      %s43 = sphi 0, %s42
      %s59 = sphi 0, %s43
      %s63 = sphi 0, %s63
      %s65 = sphi 0, %s63
      %s66 = sphi 0, %s65
      %s80 = sphi 0, %s66
      %s84 = sphi 0, %s84
      %s86 = sphi 0, %s84
      %s87 = sphi 0, %s86
      %s101 = sphi 0, %s87
      %s105 = sphi 0, %s105
      %s107 = sphi 0, %s105
      %s108 = sphi 0, %s107
      %s122 = sphi 0, %s108
      %s126 = sphi 0, %s126
      %s128 = sphi 0, %s126
      %s129 = sphi 0, %s128
      %s143 = sphi 0, %s129
      %s147 = sphi 0, %s147
      %s149 = sphi 0, %s147
      %s150 = sphi 0, %s149
      %s164 = sphi 0, %s150
      %s172 = sphi 0, %s174
      %s175 = sphi 0, %s172
      %s176 = sphi 0, %s175
      %s192 = sphi 0, %s176
    $region4: #{tpu_custom_call.1} parent=1 // loop_header_branch
      %18 = sbr.rel (%p16) target = $region8
    $region5: #{tpu_custom_call.1} parent=1 // loop_body
      %s20 = ssub.s32 %s15, 1
      %s21 = ssub.s32 %s15, 2
      %s28 = sadd.s32 1, %s23
      %p29 = scmp.ge.s32.totalorder %s28, 1
      %s30 = scalar_select %p29, 0, %s28
      %s31 = sadd.s32 1, %s22
      %s32 = scalar_select %p29, %s31, %s22
      %p33 = scmp.ge.s32.totalorder %s32, 2
      %s34 = scalar_select %p33, 0, %s32
      %s35 = ssub.s32 %s22, %s34
      %s36 = ssub.s32 %s23, %s30
      %s37 = sor.u32 %s35, %s36
      %p38 = scmp.eq.s32.totalorder %s37, 0
      %s40 = sadd.s32 %s39, 1
      %s41 = scalar_select %p38, %s39, %s40
      %p44 = pneg %p38
      %p45 = scmp.eq.s32.totalorder %s15, 1
      %p46 = por %p44, %p45
      %p47 = scmp.ne.s32.totalorder %s39, %s42
      %p48 = scmp.eq.s32.totalorder %s15, 0
      %p49 = por %p47, %p48
      %p50 = scmp.ne.s32.totalorder %s39, %s42
      %p51 = scmp.eq.s32.totalorder %s20, 1
      %p52 = por %p50, %p51
      %p53 = scmp.ne.s32.totalorder %s42, %s43
      %p54 = scmp.eq.s32.totalorder %s20, 0
      %p55 = por %p53, %p54
      %p56 = scmp.ne.s32.totalorder %s42, %s43
      %p57 = scmp.eq.s32.totalorder %s21, 1
      %p58 = por %p56, %p57
      %p60 = scmp.ne.s32.totalorder %s43, %s59
      %p61 = scmp.eq.s32.totalorder %s21, 0
      %p62 = por %p60, %p61
      %s64 = sadd.s32 %s63, 1
      %p67 = scmp.eq.s32.totalorder %s15, 1
      %p68 = scmp.ne.s32.totalorder %s63, %s65
      %p69 = scmp.eq.s32.totalorder %s15, 0
      %p70 = por %p68, %p69
      %p71 = scmp.ne.s32.totalorder %s63, %s65
      %p72 = scmp.eq.s32.totalorder %s20, 1
      %p73 = por %p71, %p72
      %p74 = scmp.ne.s32.totalorder %s65, %s66
      %p75 = scmp.eq.s32.totalorder %s20, 0
      %p76 = por %p74, %p75
      %p77 = scmp.ne.s32.totalorder %s65, %s66
      %p78 = scmp.eq.s32.totalorder %s21, 1
      %p79 = por %p77, %p78
      %p81 = scmp.ne.s32.totalorder %s66, %s80
      %p82 = scmp.eq.s32.totalorder %s21, 0
      %p83 = por %p81, %p82
      %s85 = sadd.s32 %s84, 1
      %p88 = scmp.eq.s32.totalorder %s15, 1
      %p89 = scmp.ne.s32.totalorder %s84, %s86
      %p90 = scmp.eq.s32.totalorder %s15, 0
      %p91 = por %p89, %p90
      %p92 = scmp.ne.s32.totalorder %s84, %s86
      %p93 = scmp.eq.s32.totalorder %s20, 1
      %p94 = por %p92, %p93
      %p95 = scmp.ne.s32.totalorder %s86, %s87
      %p96 = scmp.eq.s32.totalorder %s20, 0
      %p97 = por %p95, %p96
      %p98 = scmp.ne.s32.totalorder %s86, %s87
      %p99 = scmp.eq.s32.totalorder %s21, 1
      %p100 = por %p98, %p99
      %p102 = scmp.ne.s32.totalorder %s87, %s101
      %p103 = scmp.eq.s32.totalorder %s21, 0
      %p104 = por %p102, %p103
      %s106 = sadd.s32 %s105, 1
      %p109 = scmp.eq.s32.totalorder %s15, 1
      %p110 = scmp.ne.s32.totalorder %s105, %s107
      %p111 = scmp.eq.s32.totalorder %s15, 0
      %p112 = por %p110, %p111
      %p113 = scmp.ne.s32.totalorder %s105, %s107
      %p114 = scmp.eq.s32.totalorder %s20, 1
      %p115 = por %p113, %p114
      %p116 = scmp.ne.s32.totalorder %s107, %s108
      %p117 = scmp.eq.s32.totalorder %s20, 0
      %p118 = por %p116, %p117
      %p119 = scmp.ne.s32.totalorder %s107, %s108
      %p120 = scmp.eq.s32.totalorder %s21, 1
      %p121 = por %p119, %p120
      %p123 = scmp.ne.s32.totalorder %s108, %s122
      %p124 = scmp.eq.s32.totalorder %s21, 0
      %p125 = por %p123, %p124
      %s127 = sadd.s32 %s126, 1
      %p130 = scmp.eq.s32.totalorder %s15, 1
      %p131 = scmp.ne.s32.totalorder %s126, %s128
      %p132 = scmp.eq.s32.totalorder %s15, 0
      %p133 = por %p131, %p132
      %p134 = scmp.ne.s32.totalorder %s126, %s128
      %p135 = scmp.eq.s32.totalorder %s20, 1
      %p136 = por %p134, %p135
      %p137 = scmp.ne.s32.totalorder %s128, %s129
      %p138 = scmp.eq.s32.totalorder %s20, 0
      %p139 = por %p137, %p138
      %p140 = scmp.ne.s32.totalorder %s128, %s129
      %p141 = scmp.eq.s32.totalorder %s21, 1
      %p142 = por %p140, %p141
      %p144 = scmp.ne.s32.totalorder %s129, %s143
      %p145 = scmp.eq.s32.totalorder %s21, 0
      %p146 = por %p144, %p145
      %s148 = sadd.s32 %s147, 1
      %p151 = scmp.eq.s32.totalorder %s15, 1
      %p152 = scmp.ne.s32.totalorder %s147, %s149
      %p153 = scmp.eq.s32.totalorder %s15, 0
      %p154 = por %p152, %p153
      %p155 = scmp.ne.s32.totalorder %s147, %s149
      %p156 = scmp.eq.s32.totalorder %s20, 1
      %p157 = por %p155, %p156
      %p158 = scmp.ne.s32.totalorder %s149, %s150
      %p159 = scmp.eq.s32.totalorder %s20, 0
      %p160 = por %p158, %p159
      %p161 = scmp.ne.s32.totalorder %s149, %s150
      %p162 = scmp.eq.s32.totalorder %s21, 1
      %p163 = por %p161, %p162
      %p165 = scmp.ne.s32.totalorder %s150, %s164
      %p166 = scmp.eq.s32.totalorder %s21, 0
      %p167 = por %p165, %p166
      %s168 = ssub.s32 %s22, %s34
      %s169 = ssub.s32 %s23, %s30
      %s170 = sor.u32 %s168, %s169
      %p171 = scmp.eq.s32.totalorder %s170, 0
      %s173 = sadd.s32 %s172, 1
      %s174 = scalar_select %p171, %s172, %s173
      %p177 = pneg %p171
      %p178 = scmp.eq.s32.totalorder %s15, 1
      %p179 = por %p177, %p178
      %p180 = scmp.ne.s32.totalorder %s172, %s175
      %p181 = scmp.eq.s32.totalorder %s15, 0
      %p182 = por %p180, %p181
      %p183 = scmp.ne.s32.totalorder %s172, %s175
      %p184 = scmp.eq.s32.totalorder %s20, 1
      %p185 = por %p183, %p184
      %p186 = scmp.ne.s32.totalorder %s175, %s176
      %p187 = scmp.eq.s32.totalorder %s20, 0
      %p188 = por %p186, %p187
      %p189 = scmp.ne.s32.totalorder %s175, %s176
      %p190 = scmp.eq.s32.totalorder %s21, 1
      %p191 = por %p189, %p190
      %p193 = scmp.ne.s32.totalorder %s176, %s192
      %p194 = scmp.eq.s32.totalorder %s21, 0
      %p195 = por %p193, %p194
      %p196 = scmp.le.s32.totalorder 1, %s15
      %p197 = scmp.lt.s32.totalorder %s15, 3
      %p198 = pnand %p196, %p197
      %p199 = pneg %p198
      // Predicated region
      $region9: #{tpu_custom_call.1} parent=5 // pred_check
        _
      $region10: #{tpu_custom_call.1} parent=5 // pred_check_branch
        %201 = sbr.rel (%p198) target = $region12
      $region11: #{tpu_custom_call.1} parent=5 // pred_region
        %s202 = ssub.s32 %s15, 1
        // Predicated region
        $region13: #{tpu_custom_call.1} parent=11 // pred_check
          %p203 = pneg %p76
        $region14: #{tpu_custom_call.1} parent=11 // pred_check_branch
          %205 = sbr.rel (%p203) target = $region16
        $region15: #{tpu_custom_call.1} parent=11 // pred_region
          _
        $region16: #{tpu_custom_call.1} parent=11 // pred_fallthru
          _
        // Predicated region
        $region17: #{tpu_custom_call.1} parent=11 // pred_check
          %p206 = pneg %p97
        $region18: #{tpu_custom_call.1} parent=11 // pred_check_branch
          %208 = sbr.rel (%p206) target = $region20
        $region19: #{tpu_custom_call.1} parent=11 // pred_region
          _
        $region20: #{tpu_custom_call.1} parent=11 // pred_fallthru
          _
        // Predicated region
        $region21: #{tpu_custom_call.1} parent=11 // pred_check
          %p209 = pneg %p118
        $region22: #{tpu_custom_call.1} parent=11 // pred_check_branch
          %211 = sbr.rel (%p209) target = $region24
        $region23: #{tpu_custom_call.1} parent=11 // pred_region
          _
        $region24: #{tpu_custom_call.1} parent=11 // pred_fallthru
          _
        // Predicated region
        $region25: #{tpu_custom_call.1} parent=11 // pred_check
          %p212 = pneg %p139
        $region26: #{tpu_custom_call.1} parent=11 // pred_check_branch
          %214 = sbr.rel (%p212) target = $region28
        $region27: #{tpu_custom_call.1} parent=11 // pred_region
          _
        $region28: #{tpu_custom_call.1} parent=11 // pred_fallthru
          _
        // Predicated region
        $region29: #{tpu_custom_call.1} parent=11 // pred_check
          %p215 = pneg %p160
        $region30: #{tpu_custom_call.1} parent=11 // pred_check_branch
          %217 = sbr.rel (%p215) target = $region32
        $region31: #{tpu_custom_call.1} parent=11 // pred_region
          _
        $region32: #{tpu_custom_call.1} parent=11 // pred_fallthru
          _
      $region12: #{tpu_custom_call.1} parent=5 // pred_fallthru
        _
      %p218 = scmp.lt.s32.totalorder %s15, 2
      // Predicated region
      $region33: #{tpu_custom_call.1} parent=5 // pred_check
        %p219 = pneg %p218
      $region34: #{tpu_custom_call.1} parent=5 // pred_check_branch
        %221 = sbr.rel (%p219) target = $region36
      $region35: #{tpu_custom_call.1} parent=5 // pred_region
        // Predicated region
        $region37: #{tpu_custom_call.1} parent=35 // pred_check
          %p222 = pneg %p49
        $region38: #{tpu_custom_call.1} parent=35 // pred_check_branch
          %224 = sbr.rel (%p222) target = $region40
        $region39: #{tpu_custom_call.1} parent=35 // pred_region
          %p225 = scmp.lt.s32.totalorder %s22, 1
          %s226 = scalar_select %p225, %s22, 1
          %p227 = scmp.lt.s32.totalorder %s23, 0
          %s228 = scalar_select %p227, %s23, 0
          %s229 = smul.addr %s228, 3
          %s230 = smul.addr %s226, 3
          %s231 = sadd.s32 %s229, %s230
          %s232 = smul.addr %s231, 8
          %s233 = scalar_lea.vmem %s0, %s232
        $region40: #{tpu_custom_call.1} parent=35 // pred_fallthru
          _
      $region36: #{tpu_custom_call.1} parent=5 // pred_fallthru
        _
      %p234 = scmp.le.s32.totalorder 1, %s15
      %p235 = scmp.lt.s32.totalorder %s15, 3
      %p236 = pnand %p234, %p235
      %p237 = pneg %p236
      // Predicated region
      $region41: #{tpu_custom_call.1} parent=5 // pred_check
        _
      $region42: #{tpu_custom_call.1} parent=5 // pred_check_branch
        %239 = sbr.rel (%p236) target = $region44
      $region43: #{tpu_custom_call.1} parent=5 // pred_region
        %s240 = ssub.s32 %s15, 1
        %p241 = scmp.lt.s32.totalorder %s24, 1
        %s242 = scalar_select %p241, %s24, 1
        %p243 = scmp.lt.s32.totalorder %s25, 0
        %s244 = scalar_select %p243, %s25, 0
        %s245 = smul.addr %s244, 3
        %s246 = smul.addr %s242, 3
        %s247 = sadd.s32 %s245, %s246
        %s248 = smul.addr %s247, 8
        %s249 = scalar_lea.vmem %s0, %s248
        %p250 = pneg %p55
        %p251 = pneg %p52
        %p252 = pneg %p76
        %p253 = pneg %p73
        %p254 = pneg %p97
        %p255 = pneg %p94
        %p256 = pneg %p118
        %p257 = pneg %p115
        %p258 = pneg %p139
        %p259 = pneg %p136
        %p260 = pneg %p160
        %p261 = pneg %p157
        %p262 = pneg %p188
        %p263 = pneg %p185
        %s264 = sand.u32 %s175, 1
        %s265 = scalar_lea.sflag [#allocation3], %s264
        %s266 = sand.u32 %s175, 1
        %s267 = smul.addr %s266, 16
        %s268 = scalar_lea.vmem [#allocation2], %s267
        %p269 = scmp.lt.s32.totalorder %s24, 1
        %s270 = scalar_select %p269, %s24, 1
        %p271 = scmp.lt.s32.totalorder %s25, 0
        %s272 = scalar_select %p271, %s25, 0
        %s273 = smul.addr %s272, 3
        %s274 = smul.addr %s270, 3
        %s275 = sadd.s32 %s273, %s274
        %s276 = smul.addr %s275, 8
        %s277 = scalar_lea.vmem %s0, %s276
        %s278 = smul.u32 2, %s25
        %v279 = vld [vmem:[%s277] sm:$0xff]
        %v280 = vld [vmem:[%s277 + $0x8] sm:$0xff]
        %v281 = vld [vmem:[%s277 + $0x10] sm:$0xf]
        %vm282 = vcmp.ge.f32.partialorder %v279, 0.0
        %vm283 = vcmp.ge.f32.partialorder %v280, 0.0
        %vm284 = vcmp.ge.f32.partialorder %v281, 0.0
        %v285 = vmul.f32 %v279, 0.2
        %v286 = vmul.f32 %v280, 0.2
        %v287 = vmul.f32 %v281, 0.2
        %v288 = vsel %vm282, %v279, %v285
        %v289 = vsel %vm283, %v280, %v286
        %v290 = vsel %vm284, %v281, %v287
        %vm294 = vcmask 1046528
        %v295 = vrot.slane %v288, 1
        %v296 = vrot.slane %v289, 1
        %v297 = vsel %vm294, %v295, %v296
        %v298 = vrot.slane %v290, 1
        %v299 = vsel %vm294, %v296, %v298
        %300 = vrot.lane.b32.xlu0 %v297, 64
        %v301 = vpop.permute.xlu0 %300
        %302 = vrot.lane.b32.xlu0 %v299, 64
        %v303 = vpop.permute.xlu0 %302
        %304 = vrot.lane.b32.xlu0 %v298, 64
        %v305 = vpop.permute.xlu0 %304
        %vm309 = vcmask 1045504
        %v310 = vrot.slane %v288, 2
        %v311 = vrot.slane %v289, 2
        %v312 = vsel %vm309, %v310, %v311
        %v313 = vrot.slane %v290, 2
        %v314 = vsel %vm309, %v311, %v313
        %vm315 = vcmask 523264
        %v316 = vsel %vm315, %v288, %v301
        %v317 = vsel %vm315, %v289, %v303
        %v318 = vsel %vm315, %v290, %v305
        %v319 = vld [vmem:[%s1] sm:$0xff]
        %v320 = vld [vmem:[%s1 + $0x8] sm:$0xff]
        %v321 = vld [vmem:[%s1 + $0x10] sm:$0xff]
        %v322 = vld [vmem:[%s1 + $0x18] sm:$0xff]
        %v323 = vld [vmem:[%s1 + $0x20] sm:$0xff]
        %v324 = vld [vmem:[%s1 + $0x28] sm:$0xff]
        %v325 = vld [vmem:[%s1 + $0x30] sm:$0xff]
        %v326 = vld [vmem:[%s1 + $0x38] sm:$0xff]
        %v327 = vld [vmem:[%s1 + $0x40] sm:$0xff]
        %v328 = vld [vmem:[%s1 + $0x48] sm:$0xff]
        %v329 = vld [vmem:[%s1 + $0x50] sm:$0xff]
        %v330 = vld [vmem:[%s1 + $0x58] sm:$0xff]
        %v331 = vld [vmem:[%s1 + $0x60] sm:$0xff]
        %v332 = vld [vmem:[%s1 + $0x68] sm:$0xff]
        %v333 = vld [vmem:[%s1 + $0x70] sm:$0xff]
        %v334 = vld [vmem:[%s1 + $0x78] sm:$0xff]
        %v335 = vld [vmem:[%s1 + $0x80] sm:$0xff]
        %v336 = vld [vmem:[%s1 + $0x88] sm:$0xff]
        %v337 = vld [vmem:[%s1 + $0x90] sm:$0xff]
        %v338 = vld [vmem:[%s1 + $0x98] sm:$0xff]
        %v339 = vld [vmem:[%s1 + $0xa0] sm:$0xff]
        %v340 = vld [vmem:[%s1 + $0xa8] sm:$0xff]
        %v341 = vld [vmem:[%s1 + $0xb0] sm:$0xff]
        %v342 = vld [vmem:[%s1 + $0xb8] sm:$0xff]
        %v343 = vld [vmem:[%s4] sm:$0x1]
        %v345 = vlaneseq
        %v346 = vshrl.u32 %v345, 7
        %v347 = vsub.s32 0, %v346
        %v348 = vrot.slane %v343, %v347
        %v350 = vsel %vm315, %v312, 0
        %v352 = vsel %vm315, %v314, 0
        %v354 = vsel %vm315, %v313, 0
        %356 = vmatprep.subr.mxu0 0.0
        %357 = vmatpush1.msra.mxu0 %v319
        %358 = vmatprep.subr.mxu0 0.0
        %359 = vmatpush1.msra.mxu0 %v320
        %360 = vmatprep.subr.mxu0 0.0
        %361 = vmatpush1.msra.mxu0 %v321
        %362 = vmatprep.subr.mxu0 0.0
        %363 = vmatpush1.msra.mxu0 %v322
        %364 = vmatprep.subr.mxu0 0.0
        %365 = vmatpush1.msra.mxu0 %v323
        %366 = vmatprep.subr.mxu0 0.0
        %367 = vmatpush1.msra.mxu0 %v324
        %368 = vmatprep.subr.mxu0 0.0
        %369 = vmatpush1.msra.mxu0 %v325
        %370 = vmatprep.subr.mxu0 0.0
        %371 = vmatpush1.msra.mxu0 %v326
        %372 = vmatprep.subr.mxu0 0.0
        %373 = vmatpush1.msra.mxu0 %v327
        %374 = vmatprep.subr.mxu0 0.0
        %375 = vmatpush1.msra.mxu0 %v328
        %376 = vmatprep.subr.mxu0 0.0
        %377 = vmatpush1.msra.mxu0 %v329
        %378 = vmatprep.subr.mxu0 0.0
        %379 = vmatpush1.msra.mxu0 %v330
        %380 = vmatprep.subr.mxu0 0.0
        %381 = vmatpush1.msra.mxu0 %v331
        %382 = vmatprep.subr.mxu0 0.0
        %383 = vmatpush1.msra.mxu0 %v332
        %384 = vmatprep.subr.mxu0 0.0
        %385 = vmatpush1.msra.mxu0 %v333
        %386 = vmatprep.subr.mxu0 0.0
        %387 = vmatpush1.msra.mxu0 %v334
        %388 = vmatprep.subr.mxu0 0.0
        %389 = vmatpush1.msra.mxu0 %v335
        %390 = vmatprep.subr.mxu0 0.0
        %391 = vmatpush1.msra.mxu0 %v336
        %392 = vmatprep.subr.mxu0 0.0
        %393 = vmatpush1.msra.mxu0 %v337
        %394 = vmatprep.subr.mxu0 0.0
        %395 = vmatpush1.msra.mxu0 %v338
        %396 = vmatprep.subr.mxu0 0.0
        %397 = vmatpush1.msra.mxu0 %v339
        %398 = vmatprep.subr.mxu0 0.0
        %399 = vmatpush1.msra.mxu0 %v340
        %400 = vmatprep.subr.mxu0 0.0
        %401 = vmatpush1.msra.mxu0 %v341
        %402 = vmatprep.subr.mxu0 0.0
        %403 = vmatpush1.msra.mxu0 %v342
        %404 = vmatprep.subr.mxu0 0.0
        %405 = vmatpush1.msra.mxu0 0.0
        %406 = vmatprep.subr.mxu0 0.0
        %407 = vmatpush1.msra.mxu0 0.0
        %408 = vmatprep.subr.mxu0 0.0
        %409 = vmatpush1.msra.mxu0 0.0
        %410 = vmatprep.subr.mxu0 0.0
        %411 = vmatpush1.msra.mxu0 0.0
        %412 = vmatprep.subr.mxu0 0.0
        %413 = vmatpush1.msra.mxu0 0.0
        %414 = vmatprep.subr.mxu0 0.0
        %415 = vmatpush1.msra.mxu0 0.0
        %416 = vmatprep.subr.mxu0 0.0
        %417 = vmatpush1.msra.mxu0 0.0
        %418 = vmatprep.subr.mxu0 0.0
        %419 = vmatpush1.msra.mxu0 0.0
        %420 = vmatprep.mubr.f32.mxu0 %v350
        %421 = vmatmul.mubr.f32.gmra.mrb[0].mxu0 %v316
        %v422 = vpop.f32.mrb[0].mxu0
        %v423 = vadd.f32 %v348, %v422
        %v424 = vpop.f32.mrb[0].mxu0
        %425 = vmatprep.mubr.f32.mxu0 %v352
        %426 = vmatmul.mubr.f32.gmra.mrb[0].mxu0 %v317
        %v427 = vpop.f32.mrb[0].mxu0
        %v428 = vadd.f32 %v348, %v427
        %v429 = vpop.f32.mrb[0].mxu0
        %430 = vmatprep.mubr.f32.mxu0 %v354
        %431 = vmatmul.mubr.f32.gmra.mrb[0].mxu0 %v318
        %v432 = vpop.f32.mrb[0].mxu0
        %v433 = vadd.f32 %v348, %v432
        %v434 = vpop.f32.mrb[0].mxu0
        %435 = vdwg.mxu0
        %vm436 = vcmp.ge.f32.partialorder %v423, 0.0
        %vm437 = vcmp.ge.f32.partialorder %v428, 0.0
        %vm438 = vcmp.ge.f32.partialorder %v433, 0.0
        %v439 = vmul.f32 %v423, 0.2
        %v440 = vmul.f32 %v428, 0.2
        %v441 = vmul.f32 %v433, 0.2
        %v442 = vsel %vm436, %v423, %v439
        %v443 = vsel %vm437, %v428, %v440
        %v444 = vsel %vm438, %v433, %v441
        %s445 = smul.u32 %s25, 16
        %s446 = ssub.s32 %s445, 1
        %v447 = vlaneseq
        %v448 = vshrl.u32 %v447, 7
        %v449 = vadd.s32 %v448, 8
        %v450 = vadd.s32 %v448, 16
        %v451 = vstv %s446
        %v452 = vadd.s32 %v451, %v448
        %v453 = vadd.s32 %v451, %v449
        %v454 = vadd.s32 %v451, %v450
        %vm455 = vcmp.ge.s32.totalorder %v452, 0
        %vm456 = vcmp.ge.s32.totalorder %v453, 0
        %vm457 = vcmp.ge.s32.totalorder %v454, 0
        %vm458 = vcmp.lt.s32.totalorder %v452, 16
        %vm459 = vcmp.lt.s32.totalorder %v453, 16
        %vm460 = vcmp.lt.s32.totalorder %v454, 16
        %vm461 = vmand %vm455, %vm458
        %vm462 = vmand %vm456, %vm459
        %vm463 = vmand %vm457, %vm460
        %v464 = vsel %vm461, %v442, 0.0
        %v465 = vsel %vm462, %v443, 0.0
        %v466 = vsel %vm463, %v444, 0.0
        %v470 = vrot.slane %v464, 1
        %v471 = vrot.slane %v465, 1
        %v472 = vsel %vm294, %v470, %v471
        %v473 = vrot.slane %v466, 1
        %v474 = vsel %vm294, %v471, %v473
        %475 = vrot.lane.b32.xlu0 %v472, 64
        %v476 = vpop.permute.xlu0 %475
        %477 = vrot.lane.b32.xlu0 %v474, 64
        %v478 = vpop.permute.xlu0 %477
        %v481 = vrot.slane %v464, 2
        %v482 = vrot.slane %v465, 2
        %v483 = vsel %vm309, %v481, %v482
        %v484 = vrot.slane %v466, 2
        %v485 = vsel %vm309, %v482, %v484
        %v491 = vrot.slane %v279, 2
        %v492 = vrot.slane %v280, 2
        %v493 = vsel %vm309, %v491, %v492
        %v494 = vrot.slane %v281, 2
        %v495 = vsel %vm309, %v492, %v494
        %496 = vrot.lane.b32.xlu0 %v493, 64
        %v497 = vpop.permute.xlu0 %496
        %498 = vrot.lane.b32.xlu0 %v495, 64
        %v499 = vpop.permute.xlu0 %498
        %v502 = vsel %vm315, %v464, %v476
        %v503 = vsel %vm315, %v465, %v478
        %v504 = vsel %vm315, %v483, %v497
        %v505 = vsel %vm315, %v485, %v499
        %v506 = vld [vmem:[%s2] sm:$0xff]
        %v507 = vld [vmem:[%s2 + $0x8] sm:$0xff]
        %v508 = vld [vmem:[%s2 + $0x10] sm:$0xff]
        %v509 = vld [vmem:[%s2 + $0x18] sm:$0xff]
        %v510 = vld [vmem:[%s2 + $0x20] sm:$0xff]
        %v511 = vld [vmem:[%s2 + $0x28] sm:$0xff]
        %v512 = vld [vmem:[%s2 + $0x30] sm:$0xff]
        %v513 = vld [vmem:[%s2 + $0x38] sm:$0xff]
        %v514 = vld [vmem:[%s2 + $0x40] sm:$0xff]
        %v515 = vld [vmem:[%s2 + $0x48] sm:$0xff]
        %v516 = vld [vmem:[%s2 + $0x50] sm:$0xff]
        %v517 = vld [vmem:[%s2 + $0x58] sm:$0xff]
        %v518 = vld [vmem:[%s2 + $0x60] sm:$0xff]
        %v519 = vld [vmem:[%s2 + $0x68] sm:$0xff]
        %v520 = vld [vmem:[%s2 + $0x70] sm:$0xff]
        %v521 = vld [vmem:[%s2 + $0x78] sm:$0xff]
        %v522 = vld [vmem:[%s2 + $0x80] sm:$0xff]
        %v523 = vld [vmem:[%s2 + $0x88] sm:$0xff]
        %v524 = vld [vmem:[%s2 + $0x90] sm:$0xff]
        %v525 = vld [vmem:[%s2 + $0x98] sm:$0xff]
        %v526 = vld [vmem:[%s2 + $0xa0] sm:$0xff]
        %v527 = vld [vmem:[%s2 + $0xa8] sm:$0xff]
        %v528 = vld [vmem:[%s2 + $0xb0] sm:$0xff]
        %v529 = vld [vmem:[%s2 + $0xb8] sm:$0xff]
        %v530 = vld [vmem:[%s2 + $0xc0] sm:$0xff]
        %v531 = vld [vmem:[%s2 + $0xc8] sm:$0xff]
        %v532 = vld [vmem:[%s2 + $0xd0] sm:$0xff]
        %v533 = vld [vmem:[%s2 + $0xd8] sm:$0xff]
        %v534 = vld [vmem:[%s2 + $0xe0] sm:$0xff]
        %v535 = vld [vmem:[%s2 + $0xe8] sm:$0xff]
        %v536 = vld [vmem:[%s2 + $0xf0] sm:$0xff]
        %v537 = vld [vmem:[%s2 + $0xf8] sm:$0xff]
        %v538 = vld [vmem:[%s5] sm:$0x1]
        %v540 = vlaneseq
        %v541 = vshrl.u32 %v540, 7
        %v542 = vsub.s32 0, %v541
        %v543 = vrot.slane %v538, %v542
        %545 = vmatprep.subr.mxu0 0.0
        %546 = vmatpush1.msra.mxu0 %v506
        %547 = vmatprep.subr.mxu0 0.0
        %548 = vmatpush1.msra.mxu0 %v507
        %549 = vmatprep.subr.mxu0 0.0
        %550 = vmatpush1.msra.mxu0 %v508
        %551 = vmatprep.subr.mxu0 0.0
        %552 = vmatpush1.msra.mxu0 %v509
        %553 = vmatprep.subr.mxu0 0.0
        %554 = vmatpush1.msra.mxu0 %v510
        %555 = vmatprep.subr.mxu0 0.0
        %556 = vmatpush1.msra.mxu0 %v511
        %557 = vmatprep.subr.mxu0 0.0
        %558 = vmatpush1.msra.mxu0 %v512
        %559 = vmatprep.subr.mxu0 0.0
        %560 = vmatpush1.msra.mxu0 %v513
        %561 = vmatprep.subr.mxu0 0.0
        %562 = vmatpush1.msra.mxu0 %v514
        %563 = vmatprep.subr.mxu0 0.0
        %564 = vmatpush1.msra.mxu0 %v515
        %565 = vmatprep.subr.mxu0 0.0
        %566 = vmatpush1.msra.mxu0 %v516
        %567 = vmatprep.subr.mxu0 0.0
        %568 = vmatpush1.msra.mxu0 %v517
        %569 = vmatprep.subr.mxu0 0.0
        %570 = vmatpush1.msra.mxu0 %v518
        %571 = vmatprep.subr.mxu0 0.0
        %572 = vmatpush1.msra.mxu0 %v519
        %573 = vmatprep.subr.mxu0 0.0
        %574 = vmatpush1.msra.mxu0 %v520
        %575 = vmatprep.subr.mxu0 0.0
        %576 = vmatpush1.msra.mxu0 %v521
        %577 = vmatprep.subr.mxu0 0.0
        %578 = vmatpush1.msra.mxu0 %v522
        %579 = vmatprep.subr.mxu0 0.0
        %580 = vmatpush1.msra.mxu0 %v523
        %581 = vmatprep.subr.mxu0 0.0
        %582 = vmatpush1.msra.mxu0 %v524
        %583 = vmatprep.subr.mxu0 0.0
        %584 = vmatpush1.msra.mxu0 %v525
        %585 = vmatprep.subr.mxu0 0.0
        %586 = vmatpush1.msra.mxu0 %v526
        %587 = vmatprep.subr.mxu0 0.0
        %588 = vmatpush1.msra.mxu0 %v527
        %589 = vmatprep.subr.mxu0 0.0
        %590 = vmatpush1.msra.mxu0 %v528
        %591 = vmatprep.subr.mxu0 0.0
        %592 = vmatpush1.msra.mxu0 %v529
        %593 = vmatprep.subr.mxu0 0.0
        %594 = vmatpush1.msra.mxu0 %v530
        %595 = vmatprep.subr.mxu0 0.0
        %596 = vmatpush1.msra.mxu0 %v531
        %597 = vmatprep.subr.mxu0 0.0
        %598 = vmatpush1.msra.mxu0 %v532
        %599 = vmatprep.subr.mxu0 0.0
        %600 = vmatpush1.msra.mxu0 %v533
        %601 = vmatprep.subr.mxu0 0.0
        %602 = vmatpush1.msra.mxu0 %v534
        %603 = vmatprep.subr.mxu0 0.0
        %604 = vmatpush1.msra.mxu0 %v535
        %605 = vmatprep.subr.mxu0 0.0
        %606 = vmatpush1.msra.mxu0 %v536
        %607 = vmatprep.subr.mxu0 0.0
        %608 = vmatpush1.msra.mxu0 %v537
        %609 = vmatprep.mubr.f32.mxu0 %v504
        %610 = vmatmul.mubr.f32.gmra.mrb[0].mxu0 %v502
        %v611 = vpop.f32.mrb[0].mxu0
        %v612 = vadd.f32 %v543, %v611
        %v613 = vpop.f32.mrb[0].mxu0
        %614 = vmatprep.mubr.f32.mxu0 %v505
        %615 = vmatmul.mubr.f32.gmra.mrb[0].mxu0 %v503
        %v616 = vpop.f32.mrb[0].mxu0
        %v617 = vadd.f32 %v543, %v616
        %v618 = vpop.f32.mrb[0].mxu0
        %619 = vdwg.mxu0
        %620 = vst [vmem:[%s268] sm:$0xff] %v612
        %621 = vst [vmem:[%s268 + $0x8] sm:$0xff] %v617
        %s622 = sand.u32 %s175, 1
        %s623 = scalar_lea.sflag [#allocation3], %s622
        %s624 = sand.u32 %s175, 1
        %s625 = smul.addr %s624, 16
        %s626 = scalar_lea.vmem [#allocation2], %s625
        // Predicated region
        $region45: #{tpu_custom_call.1} parent=43 // pred_check
          %p627 = pneg %p185
        $region46: #{tpu_custom_call.1} parent=43 // pred_check_branch
          %629 = sbr.rel (%p627) target = $region48
        $region47: #{tpu_custom_call.1} parent=43 // pred_region
          %s630 = smul.u32 2, %s25
          %s632 = ssub.s32 256, 256
          %633 = vsyncadd %s623, %s632
          %s634 = smul.addr %s24, 2
          %s635 = sadd.s32 %s630, %s634
          %s636 = smul.addr %s635, 128
          %s637 = scalar_lea.hbm %s6, %s636
          %s638 = sshll.u32 %s626, 4
          %s639 = int_to_ptr.vmem [resolvable:$true] %s638
          %644 = dma.vmem_to_hbm [thread:$0]  %s639, 256, %s637, %s623, 128, 128, 8
        $region48: #{tpu_custom_call.1} parent=43 // pred_fallthru
          _
      $region44: #{tpu_custom_call.1} parent=5 // pred_fallthru
        _
      %p645 = scmp.le.s32.totalorder 2, %s15
      // Predicated region
      $region49: #{tpu_custom_call.1} parent=5 // pred_check
        %p646 = pneg %p645
      $region50: #{tpu_custom_call.1} parent=5 // pred_check_branch
        %648 = sbr.rel (%p646) target = $region52
      $region51: #{tpu_custom_call.1} parent=5 // pred_region
        %s649 = ssub.s32 %s15, 2
        // Predicated region
        $region53: #{tpu_custom_call.1} parent=51 // pred_check
          %p650 = pneg %p191
        $region54: #{tpu_custom_call.1} parent=51 // pred_check_branch
          %652 = sbr.rel (%p650) target = $region56
        $region55: #{tpu_custom_call.1} parent=51 // pred_region
          %s653 = sand.u32 %s176, 1
          %s654 = scalar_lea.sflag [#allocation3], %s653
          %s655 = sand.u32 %s176, 1
          %s656 = smul.addr %s655, 16
          %s657 = scalar_lea.vmem [#allocation2], %s656
          %658 = dma.done %s654, 256
        $region56: #{tpu_custom_call.1} parent=51 // pred_fallthru
          _
      $region52: #{tpu_custom_call.1} parent=5 // pred_fallthru
        _
    $region6: #{tpu_custom_call.1} parent=1 // loop_footer
      %s19 = sadd.s32 1, %s15
    $region7: #{tpu_custom_call.1} parent=1 // loop_footer_branch
      %14 = sbr.rel target = $region3
    $region8: #{tpu_custom_call.1} parent=1 // loop_exit
      _
    %659 = vsyncpa [#allocation3], 1
    %s660 = scalar_lea.sflag [#allocation3], 1
    %661 = vsyncpa %s660, 1

</llo_original>
